<compile_context>
chip_gen: v6e
topology: v6e:2x2x1
jax: 0.10.0
libtpu: 0.0.40
codegen_flags: <defaults>
</compile_context>

<pallas_src>
import functools

import jax
import jax.numpy as jnp
from jax import lax
from jax.experimental import pallas as pl
from jax.experimental.pallas import tpu as pltpu


# ---------------------------------------------------------------------------
# Kernel
# ---------------------------------------------------------------------------
def _gaussian_kernel(x_ref, wt_ref, b_ref, o_ref, *, scale, use_mxu,
                     bf16_mxu_inputs):
    """out = exp(-(scale * (x @ W^T + b))**2) for one row tile.

    x_ref : (bm, kk)      input rows (kk = K, or fold*K on the fold path)
    wt_ref: (kk, lanes)   W^T (block-diagonal on the fold path)
    b_ref : (1, lanes)    bias (tiled per fold group on the fold path)
    o_ref : (bm, lanes)   output tile
    """
    if use_mxu:
        x = x_ref[...]
        w = wt_ref[...]
        if bf16_mxu_inputs:
            x = x.astype(jnp.bfloat16)
            w = w.astype(jnp.bfloat16)
        z = jnp.dot(x, w, preferred_element_type=jnp.float32)
        z = z + b_ref[...].astype(jnp.float32)
    else:
        # Tiny contraction (< 16 columns): kk broadcast-FMAs on the VPU; never
        # touch the MXU.  Zero columns of the block-diagonal weight cost one
        # multiply-by-zero each and need no selects.
        kk = x_ref.shape[-1]
        z = jnp.broadcast_to(b_ref[...].astype(jnp.float32), o_ref.shape)
        for j in range(kk):                      # static unroll; kk < 16
            z = z + (x_ref[:, j:j + 1].astype(jnp.float32)
                     * wt_ref[j:j + 1, :].astype(jnp.float32))
    sz = scale * z
    o_ref[...] = jnp.exp(-(sz * sz)).astype(o_ref.dtype)    # EUP exp


# ---------------------------------------------------------------------------
# Sizing helpers (generation-aware)
# ---------------------------------------------------------------------------
def _physical_vmem_bytes():
    """Per-core VMEM capacity; conservative fallback is the v7x value."""
    try:
        info = pltpu.get_tpu_info()
        for name in ("vmem_capacity_bytes", "vmem_bytes", "vmem_size_bytes"):
            v = getattr(info, name, None)
            if v:
                return int(v)
    except Exception:
        pass
    return 64 * 1024 * 1024


def _pick_block_rows(n_rows, row_bytes, vmem_budget, target_tile_bytes):
    """Row tile sized from target bytes/step, capped by the VMEM budget for the
    double-buffered input+output tiles.  Interior blocks are a multiple of 8
    rows; if the whole array fits, one full-extent block is used (always a
    legal block shape).  The grid uses pl.cdiv, so the last block may be
    ragged."""
    row_bytes = max(row_bytes, 1)
    bm = max(1, target_tile_bytes // row_bytes)
    bm = min(bm, max(1, vmem_budget // (2 * row_bytes)))     # 2x: double-buffer
    if bm >= n_rows:
        return n_rows
    return max(8, (bm // 8) * 8)


# ---------------------------------------------------------------------------
# Wrapper
# ---------------------------------------------------------------------------
def gaussian_layer(x, weight, bias=None, *, scale=30.0, out_dtype=None,
                   target_tile_bytes=8 * 1024 * 1024, mxu_bf16_inputs=False):
    """Pallas TPU forward of GaussianLayer: exp(-(scale * (x @ W.T + b))**2).

    x: (N, in_features), weight: (out_features, in_features), bias: (out_features,)

    out_dtype=jnp.bfloat16 is recommended at call sites for this store-bound
    kernel (halves the dominant HBM write stream); the default matches x.dtype.
    """
    n, k = x.shape
    f, k2 = weight.shape
    assert k == k2, "weight shape mismatch"
    if bias is None:
        bias = jnp.zeros((f,), weight.dtype)
    out_dtype = x.dtype if out_dtype is None else out_dtype
    scale = float(scale)

    # Generation-aware VMEM sizing.
    vmem_cap = _physical_vmem_bytes()
    vmem_limit = max(32 * 1024 * 1024, min(vmem_cap // 2, 64 * 1024 * 1024))
    vmem_budget = int(vmem_limit * 0.70)      # headroom for weights / internals

    out_bytes = jnp.dtype(out_dtype).itemsize
    in_bytes = jnp.dtype(x.dtype).itemsize

    # Lane folding: when F < 128 divides 128, fold `fold` consecutive rows into
    # one 128-lane output row so every store is a full-lane unmasked vst.
    fold = 128 // f if (f < 128 and 128 % f == 0) else 1
    if fold > 1 and n % fold != 0:
        fold = 1

    wt_t = weight.T                                          # (K, F)
    if fold > 1:
        n_rows = n // fold
        kk = fold * k
        lanes = fold * f                                     # == 128
        # Block-diagonal W^T: row block s feeds lane block s only.
        eye = jnp.eye(fold, dtype=weight.dtype)
        wt_in = (eye[:, None, :, None] * wt_t[None, :, None, :]
                 ).reshape(kk, lanes)
        b_in = jnp.tile(bias.reshape(1, f), (1, fold))       # (1, 128)
        x_in = x.reshape(n_rows, kk)                         # free row-major view
    else:
        n_rows, kk, lanes = n, k, f
        wt_in = wt_t
        b_in = bias.reshape(1, f)
        x_in = x

    row_bytes = lanes * out_bytes + kk * in_bytes
    bm = _pick_block_rows(n_rows, row_bytes, vmem_budget, target_tile_bytes)
    grid = (pl.cdiv(n_rows, bm),)

    kernel = functools.partial(_gaussian_kernel, scale=scale,
                               use_mxu=(kk >= 16),
                               bf16_mxu_inputs=mxu_bf16_inputs)

    out = pl.pallas_call(
        kernel,
        out_shape=jax.ShapeDtypeStruct((n_rows, lanes), out_dtype),
        grid_spec=pltpu.PrefetchScalarGridSpec(
            num_scalar_prefetch=0,
            grid=grid,
            in_specs=[
                pl.BlockSpec((bm, kk), lambda i: (i, 0)),      # x row tile
                pl.BlockSpec((kk, lanes), lambda i: (0, 0)),   # W^T (resident)
                pl.BlockSpec((1, lanes), lambda i: (0, 0)),    # bias (resident)
            ],
            out_specs=pl.BlockSpec((bm, lanes), lambda i: (i, 0)),
        ),
        compiler_params=pltpu.CompilerParams(
            dimension_semantics=("parallel",),
            vmem_limit_bytes=vmem_limit,
        ),
    )(x_in, wt_in, b_in)

    if fold > 1:
        out = out.reshape(n, f)                              # free row-major view
    return out


def gaussian_layer_ref(x, weight, bias, scale=30.0):
    z = jnp.dot(x, weight.T, precision=lax.Precision.HIGHEST) + bias[None, :]
    return jnp.exp(-(scale * z) ** 2)


# TODO(synk): LOGGER calls and Initializer.gaussian_init have no kernel-side
# equivalent; the init is replicated below as uniform(-weight_init, weight_init).
if __name__ == "__main__":
    key = jax.random.PRNGKey(0)

    def make_inputs(k, n, in_f, out_f, w_init=0.1):
        kx, kw, kb = jax.random.split(k, 3)
        x = jax.random.uniform(kx, (n, in_f), jnp.float32, -1.0, 1.0)
        w = jax.random.uniform(kw, (out_f, in_f), jnp.float32, -w_init, w_init)
        b = jax.random.uniform(kb, (out_f,), jnp.float32, -w_init, w_init)
        return x, w, b

    k1, k2, k3, k4 = jax.random.split(key, 4)

    # 1) Typical first INR layer: 2-D coords -> 64 features (lane-folded VPU
    #    path, single full-extent block), f32 output.
    x, w, b = make_inputs(k1, 256, 2, 64)
    out = jax.block_until_ready(gaussian_layer(x, w, b, scale=30.0))
    ref = gaussian_layer_ref(x, w, b, scale=30.0)
    assert out.shape == ref.shape and out.dtype == ref.dtype
    assert jnp.allclose(out, ref, atol=1e-5, rtol=1e-5), "fold path mismatch"

    # 2) Same layer with a tiny per-step tile to force a multi-step grid with a
    #    ragged last block, and bf16 output stores (halved write stream).
    x, w, b = make_inputs(k2, 1000, 2, 64)
    out = jax.block_until_ready(
        gaussian_layer(x, w, b, scale=30.0, target_tile_bytes=64 * 1024,
                       out_dtype=jnp.bfloat16))
    ref = gaussian_layer_ref(x, w, b, scale=30.0)
    assert out.shape == ref.shape and out.dtype == jnp.bfloat16
    assert jnp.allclose(out.astype(jnp.float32), ref, atol=8e-3, rtol=8e-3), \
        "ragged bf16 fold path mismatch"

    # 3) Hidden-layer shapes: 64 -> 256 features (MXU path, f32 dot).
    x, w, b = make_inputs(k3, 512, 64, 256)
    out = jax.block_until_ready(gaussian_layer(x, w, b, scale=1.0))
    ref = gaussian_layer_ref(x, w, b, scale=1.0)
    assert out.shape == ref.shape
    assert jnp.allclose(out, ref, atol=1e-4, rtol=1e-4), "mxu path mismatch"

    # 4) Non-128-multiple out_features (32 -> 96): direct (bm, 96) stores, no
    #    pad/slice; also exercises the optional bf16 MXU-input cast.
    x, w, b = make_inputs(k4, 200, 32, 96)
    out = jax.block_until_ready(
        gaussian_layer(x, w, b, scale=1.0, mxu_bf16_inputs=True))
    ref = gaussian_layer_ref(x, w, b, scale=1.0)
    assert out.shape == ref.shape
    assert jnp.allclose(out, ref, atol=1e-2, rtol=1e-2), "F=96 path mismatch"

    print("KERNEL_OK")
</pallas_src>

<mosaic_0001>
module attributes {stable_mosaic.version = 11 : i64} {
  func.func @_gaussian_kernel(%arg0: i32, %arg1: memref<128x4xf32, #tpu.memory_space<vmem>>, %arg2: memref<4x128xf32, #tpu.memory_space<vmem>>, %arg3: memref<1x128xf32, #tpu.memory_space<vmem>>, %arg4: memref<128x128xf32, #tpu.memory_space<vmem>>) attributes {dimension_semantics = [#tpu.dimension_semantics<parallel>], iteration_bounds = array<i64: 1>, scalar_prefetch = 0 : i64, scratch_operands = 0 : i64, tpu.core_type = #tpu.core_type<tc>, window_params = [{transform_indices = @transform_0, window_bounds = array<i64: 128, 4>}, {pipeline_mode = #tpu.pipeline_mode<synchronous>, transform_indices = @transform_1, window_bounds = array<i64: 4, 128>}, {pipeline_mode = #tpu.pipeline_mode<synchronous>, transform_indices = @transform_2, window_bounds = array<i64: 1, 128>}, {transform_indices = @transform_3, window_bounds = array<i64: 128, 128>}]} {
    %c0 = arith.constant 0 : index
    %c0_0 = arith.constant 0 : index
    %0 = vector.load %arg3[%c0, %c0_0] : memref<1x128xf32, #tpu.memory_space<vmem>>, vector<1x128xf32>
    %1 = vector.shape_cast %0 : vector<1x128xf32> to vector<1x128xf32>
    %2 = vector.broadcast %1 : vector<1x128xf32> to vector<128x128xf32>
    %c0_1 = arith.constant 0 : index
    %c0_2 = arith.constant 0 : index
    %3 = vector.load %arg1[%c0_1, %c0_2] : memref<128x4xf32, #tpu.memory_space<vmem>>, vector<128x1xf32>
    %c0_3 = arith.constant 0 : index
    %c0_4 = arith.constant 0 : index
    %4 = vector.load %arg2[%c0_3, %c0_4] : memref<4x128xf32, #tpu.memory_space<vmem>>, vector<1x128xf32>
    %5 = vector.broadcast %3 : vector<128x1xf32> to vector<128x128xf32>
    %6 = vector.broadcast %4 : vector<1x128xf32> to vector<128x128xf32>
    %7 = arith.mulf %5, %6 : vector<128x128xf32>
    %8 = arith.addf %2, %7 : vector<128x128xf32>
    %c0_5 = arith.constant 0 : index
    %c1 = arith.constant 1 : index
    %9 = vector.load %arg1[%c0_5, %c1] : memref<128x4xf32, #tpu.memory_space<vmem>>, vector<128x1xf32>
    %c1_6 = arith.constant 1 : index
    %c0_7 = arith.constant 0 : index
    %10 = vector.load %arg2[%c1_6, %c0_7] : memref<4x128xf32, #tpu.memory_space<vmem>>, vector<1x128xf32>
    %11 = vector.broadcast %9 : vector<128x1xf32> to vector<128x128xf32>
    %12 = vector.broadcast %10 : vector<1x128xf32> to vector<128x128xf32>
    %13 = arith.mulf %11, %12 : vector<128x128xf32>
    %14 = arith.addf %8, %13 : vector<128x128xf32>
    %c0_8 = arith.constant 0 : index
    %c2 = arith.constant 2 : index
    %15 = vector.load %arg1[%c0_8, %c2] : memref<128x4xf32, #tpu.memory_space<vmem>>, vector<128x1xf32>
    %c2_9 = arith.constant 2 : index
    %c0_10 = arith.constant 0 : index
    %16 = vector.load %arg2[%c2_9, %c0_10] : memref<4x128xf32, #tpu.memory_space<vmem>>, vector<1x128xf32>
    %17 = vector.broadcast %15 : vector<128x1xf32> to vector<128x128xf32>
    %18 = vector.broadcast %16 : vector<1x128xf32> to vector<128x128xf32>
    %19 = arith.mulf %17, %18 : vector<128x128xf32>
    %20 = arith.addf %14, %19 : vector<128x128xf32>
    %c0_11 = arith.constant 0 : index
    %c3 = arith.constant 3 : index
    %21 = vector.load %arg1[%c0_11, %c3] : memref<128x4xf32, #tpu.memory_space<vmem>>, vector<128x1xf32>
    %c3_12 = arith.constant 3 : index
    %c0_13 = arith.constant 0 : index
    %22 = vector.load %arg2[%c3_12, %c0_13] : memref<4x128xf32, #tpu.memory_space<vmem>>, vector<1x128xf32>
    %23 = vector.broadcast %21 : vector<128x1xf32> to vector<128x128xf32>
    %24 = vector.broadcast %22 : vector<1x128xf32> to vector<128x128xf32>
    %25 = arith.mulf %23, %24 : vector<128x128xf32>
    %26 = arith.addf %20, %25 : vector<128x128xf32>
    %cst = arith.constant 3.000000e+01 : f32
    %27 = vector.broadcast %cst : f32 to vector<128x128xf32>
    %28 = arith.mulf %27, %26 : vector<128x128xf32>
    %29 = arith.mulf %28, %28 : vector<128x128xf32>
    %cst_14 = arith.constant 0.000000e+00 : f32
    %30 = vector.broadcast %cst_14 : f32 to vector<128x128xf32>
    %31 = arith.subf %30, %29 : vector<128x128xf32>
    %32 = math.exp %31 : vector<128x128xf32>
    %c0_15 = arith.constant 0 : index
    %c0_16 = arith.constant 0 : index
    %33 = vector.load %arg4[%c0_15, %c0_16] : memref<128x128xf32, #tpu.memory_space<vmem>>, vector<128x128xf32>
    tpu.vector_store %arg4[%c0_15, %c0_16], %32 {strides = array<i32>} : memref<128x128xf32, #tpu.memory_space<vmem>>, vector<128x128xf32>,
    return
  }
  func.func @transform_0(%arg0: i32) -> (i32, i32) {
    %c0_i32 = arith.constant 0 : i32
    %c0_i32_0 = arith.constant 0 : i32
    return %arg0, %c0_i32 : i32, i32
  }
  func.func @transform_1(%arg0: i32) -> (i32, i32) {
    %c0_i32 = arith.constant 0 : i32
    %c0_i32_0 = arith.constant 0 : i32
    %c0_i32_1 = arith.constant 0 : i32
    return %c0_i32, %c0_i32_0 : i32, i32
  }
  func.func @transform_2(%arg0: i32) -> (i32, i32) {
    %c0_i32 = arith.constant 0 : i32
    %c0_i32_0 = arith.constant 0 : i32
    %c0_i32_1 = arith.constant 0 : i32
    return %c0_i32, %c0_i32_0 : i32, i32
  }
  func.func @transform_3(%arg0: i32) -> (i32, i32) {
    %c0_i32 = arith.constant 0 : i32
    %c0_i32_0 = arith.constant 0 : i32
    return %arg0, %c0_i32 : i32, i32
  }
}

</mosaic_0001>

<llo_original>
// kernel: tpu_custom_call.1
$region0: #{tpu_custom_call.1}
  #allocation0 [shape = 'u32[]', space=smem, size = 0x4, offset = 0x4, fixed_abs, tag = 'smem constant byte address 0x4 - core index']
  #allocation1 [shape = 'u32[144,128]{1,0:T(1,128)}', space=vmem, size = 0x12000, scoped, tag = 'internal scratch']
  %s0 = inlined_call_operand.vmem [shape: f32[128,4], index: 0, kind: input, shape index: {}]
  %s1 = inlined_call_operand.vmem [shape: f32[4,128], index: 1, kind: input, shape index: {}]
  %s2 = inlined_call_operand.vmem [shape: f32[1,128], index: 2, kind: input, shape index: {}]
  %s3 = inlined_call_operand.hbm [shape: f32[128,128], index: 3, kind: output, shape index: {}]
  %s4 = sld [smem:[#allocation0]]
  $region22: #{tpu_custom_call.1} parent=0
    _
  %s6 = ssub.s32 1, %s4
  %s7 = scalar_select 0, %s6, %s4
  $region1: #{tpu_custom_call.1} parent=0
    #allocation2 [shape = 'u8[65536]{0}', space=vmem, size = 0x10000, scoped, tag = 'output window, operand 0, single buffered']
    #allocation3 [shape = 's32[1]{0}', space=sflag, size = 0x4, scoped, tag = 'scoped memory for tpu_custom_call.1']
    %8 = vsyncpa [#allocation3], 0
    // Predicated region
    $region2: #{tpu_custom_call.1} parent=1 // pred_check
      _
    $region3: #{tpu_custom_call.1} parent=1 // pred_check_branch
      %10 = sbr.rel (0) target = $region5
    $region4: #{tpu_custom_call.1} parent=1 // pred_region
      _
    $region5: #{tpu_custom_call.1} parent=1 // pred_fallthru
      _
    // Predicated region
    $region6: #{tpu_custom_call.1} parent=1 // pred_check
      _
    $region7: #{tpu_custom_call.1} parent=1 // pred_check_branch
      %12 = sbr.rel (0) target = $region9
    $region8: #{tpu_custom_call.1} parent=1 // pred_region
      _
    $region9: #{tpu_custom_call.1} parent=1 // pred_fallthru
      _
    // Predicated region
    $region10: #{tpu_custom_call.1} parent=1 // pred_check
      _
    $region11: #{tpu_custom_call.1} parent=1 // pred_check_branch
      %14 = sbr.rel (0) target = $region13
    $region12: #{tpu_custom_call.1} parent=1 // pred_region
      _
    $region13: #{tpu_custom_call.1} parent=1 // pred_fallthru
      _
    %v15 = vld [vmem:[%s2] sm:$0x1]
    %v17 = vlaneseq
    %v18 = vshrl.u32 %v17, 7
    %v19 = vsub.s32 0, %v18
    %v20 = vrot.slane %v15, %v19
    %v22 = vld [vmem:[%s0] sm:$0xff]
    %v23 = vld [vmem:[%s0 + $0x8] sm:$0xff]
    %v24 = vld [vmem:[%s0 + $0x10] sm:$0xff]
    %v25 = vld [vmem:[%s0 + $0x18] sm:$0xff]
    %v26 = vld [vmem:[%s0 + $0x20] sm:$0xff]
    %v27 = vld [vmem:[%s0 + $0x28] sm:$0xff]
    %v28 = vld [vmem:[%s0 + $0x30] sm:$0xff]
    %v29 = vld [vmem:[%s0 + $0x38] sm:$0xff]
    %v30 = vld [vmem:[%s0 + $0x40] sm:$0xff]
    %v31 = vld [vmem:[%s0 + $0x48] sm:$0xff]
    %v32 = vld [vmem:[%s0 + $0x50] sm:$0xff]
    %v33 = vld [vmem:[%s0 + $0x58] sm:$0xff]
    %v34 = vld [vmem:[%s0 + $0x60] sm:$0xff]
    %v35 = vld [vmem:[%s0 + $0x68] sm:$0xff]
    %v36 = vld [vmem:[%s0 + $0x70] sm:$0xff]
    %v37 = vld [vmem:[%s0 + $0x78] sm:$0xff]
    %v38 = vld [vmem:[%s1] sm:$0x1]
    %40 = vset.pattern.permute.xlu0 0
    %41 = vperm.xlu0 %40, %v22
    %v42 = vpop.permute.xlu0 %41
    %45 = vset.pattern.permute.xlu0 0
    %46 = vperm.xlu0 %45, %v23
    %v47 = vpop.permute.xlu0 %46
    %50 = vset.pattern.permute.xlu0 0
    %51 = vperm.xlu0 %50, %v24
    %v52 = vpop.permute.xlu0 %51
    %55 = vset.pattern.permute.xlu0 0
    %56 = vperm.xlu0 %55, %v25
    %v57 = vpop.permute.xlu0 %56
    %60 = vset.pattern.permute.xlu0 0
    %61 = vperm.xlu0 %60, %v26
    %v62 = vpop.permute.xlu0 %61
    %65 = vset.pattern.permute.xlu0 0
    %66 = vperm.xlu0 %65, %v27
    %v67 = vpop.permute.xlu0 %66
    %70 = vset.pattern.permute.xlu0 0
    %71 = vperm.xlu0 %70, %v28
    %v72 = vpop.permute.xlu0 %71
    %75 = vset.pattern.permute.xlu0 0
    %76 = vperm.xlu0 %75, %v29
    %v77 = vpop.permute.xlu0 %76
    %80 = vset.pattern.permute.xlu0 0
    %81 = vperm.xlu0 %80, %v30
    %v82 = vpop.permute.xlu0 %81
    %85 = vset.pattern.permute.xlu0 0
    %86 = vperm.xlu0 %85, %v31
    %v87 = vpop.permute.xlu0 %86
    %90 = vset.pattern.permute.xlu0 0
    %91 = vperm.xlu0 %90, %v32
    %v92 = vpop.permute.xlu0 %91
    %95 = vset.pattern.permute.xlu0 0
    %96 = vperm.xlu0 %95, %v33
    %v97 = vpop.permute.xlu0 %96
    %100 = vset.pattern.permute.xlu0 0
    %101 = vperm.xlu0 %100, %v34
    %v102 = vpop.permute.xlu0 %101
    %105 = vset.pattern.permute.xlu0 0
    %106 = vperm.xlu0 %105, %v35
    %v107 = vpop.permute.xlu0 %106
    %110 = vset.pattern.permute.xlu0 0
    %111 = vperm.xlu0 %110, %v36
    %v112 = vpop.permute.xlu0 %111
    %115 = vset.pattern.permute.xlu0 0
    %116 = vperm.xlu0 %115, %v37
    %v117 = vpop.permute.xlu0 %116
    %v119 = vlaneseq
    %v120 = vshrl.u32 %v119, 7
    %v121 = vsub.s32 0, %v120
    %v122 = vrot.slane %v38, %v121
    %v123 = vmul.f32 %v42, %v122
    %v124 = vmul.f32 %v47, %v122
    %v125 = vmul.f32 %v52, %v122
    %v126 = vmul.f32 %v57, %v122
    %v127 = vmul.f32 %v62, %v122
    %v128 = vmul.f32 %v67, %v122
    %v129 = vmul.f32 %v72, %v122
    %v130 = vmul.f32 %v77, %v122
    %v131 = vmul.f32 %v82, %v122
    %v132 = vmul.f32 %v87, %v122
    %v133 = vmul.f32 %v92, %v122
    %v134 = vmul.f32 %v97, %v122
    %v135 = vmul.f32 %v102, %v122
    %v136 = vmul.f32 %v107, %v122
    %v137 = vmul.f32 %v112, %v122
    %v138 = vmul.f32 %v117, %v122
    %v139 = vadd.f32 %v20, %v123
    %v140 = vadd.f32 %v20, %v124
    %v141 = vadd.f32 %v20, %v125
    %v142 = vadd.f32 %v20, %v126
    %v143 = vadd.f32 %v20, %v127
    %v144 = vadd.f32 %v20, %v128
    %v145 = vadd.f32 %v20, %v129
    %v146 = vadd.f32 %v20, %v130
    %v147 = vadd.f32 %v20, %v131
    %v148 = vadd.f32 %v20, %v132
    %v149 = vadd.f32 %v20, %v133
    %v150 = vadd.f32 %v20, %v134
    %v151 = vadd.f32 %v20, %v135
    %v152 = vadd.f32 %v20, %v136
    %v153 = vadd.f32 %v20, %v137
    %v154 = vadd.f32 %v20, %v138
    %v155 = vld [vmem:[%s1 + $0x1] sm:$0x1]
    %156 = vset.pattern.permute.xlu0 1
    %157 = vperm.xlu0 %156, %v22
    %v158 = vpop.permute.xlu0 %157
    %160 = vset.pattern.permute.xlu0 1
    %161 = vperm.xlu0 %160, %v23
    %v162 = vpop.permute.xlu0 %161
    %164 = vset.pattern.permute.xlu0 1
    %165 = vperm.xlu0 %164, %v24
    %v166 = vpop.permute.xlu0 %165
    %168 = vset.pattern.permute.xlu0 1
    %169 = vperm.xlu0 %168, %v25
    %v170 = vpop.permute.xlu0 %169
    %172 = vset.pattern.permute.xlu0 1
    %173 = vperm.xlu0 %172, %v26
    %v174 = vpop.permute.xlu0 %173
    %176 = vset.pattern.permute.xlu0 1
    %177 = vperm.xlu0 %176, %v27
    %v178 = vpop.permute.xlu0 %177
    %180 = vset.pattern.permute.xlu0 1
    %181 = vperm.xlu0 %180, %v28
    %v182 = vpop.permute.xlu0 %181
    %184 = vset.pattern.permute.xlu0 1
    %185 = vperm.xlu0 %184, %v29
    %v186 = vpop.permute.xlu0 %185
    %188 = vset.pattern.permute.xlu0 1
    %189 = vperm.xlu0 %188, %v30
    %v190 = vpop.permute.xlu0 %189
    %192 = vset.pattern.permute.xlu0 1
    %193 = vperm.xlu0 %192, %v31
    %v194 = vpop.permute.xlu0 %193
    %196 = vset.pattern.permute.xlu0 1
    %197 = vperm.xlu0 %196, %v32
    %v198 = vpop.permute.xlu0 %197
    %200 = vset.pattern.permute.xlu0 1
    %201 = vperm.xlu0 %200, %v33
    %v202 = vpop.permute.xlu0 %201
    %204 = vset.pattern.permute.xlu0 1
    %205 = vperm.xlu0 %204, %v34
    %v206 = vpop.permute.xlu0 %205
    %208 = vset.pattern.permute.xlu0 1
    %209 = vperm.xlu0 %208, %v35
    %v210 = vpop.permute.xlu0 %209
    %212 = vset.pattern.permute.xlu0 1
    %213 = vperm.xlu0 %212, %v36
    %v214 = vpop.permute.xlu0 %213
    %216 = vset.pattern.permute.xlu0 1
    %217 = vperm.xlu0 %216, %v37
    %v218 = vpop.permute.xlu0 %217
    %v220 = vlaneseq
    %v221 = vshrl.u32 %v220, 7
    %v222 = vsub.s32 0, %v221
    %v223 = vrot.slane %v155, %v222
    %v224 = vmul.f32 %v158, %v223
    %v225 = vmul.f32 %v162, %v223
    %v226 = vmul.f32 %v166, %v223
    %v227 = vmul.f32 %v170, %v223
    %v228 = vmul.f32 %v174, %v223
    %v229 = vmul.f32 %v178, %v223
    %v230 = vmul.f32 %v182, %v223
    %v231 = vmul.f32 %v186, %v223
    %v232 = vmul.f32 %v190, %v223
    %v233 = vmul.f32 %v194, %v223
    %v234 = vmul.f32 %v198, %v223
    %v235 = vmul.f32 %v202, %v223
    %v236 = vmul.f32 %v206, %v223
    %v237 = vmul.f32 %v210, %v223
    %v238 = vmul.f32 %v214, %v223
    %v239 = vmul.f32 %v218, %v223
    %v240 = vadd.f32 %v139, %v224
    %v241 = vadd.f32 %v140, %v225
    %v242 = vadd.f32 %v141, %v226
    %v243 = vadd.f32 %v142, %v227
    %v244 = vadd.f32 %v143, %v228
    %v245 = vadd.f32 %v144, %v229
    %v246 = vadd.f32 %v145, %v230
    %v247 = vadd.f32 %v146, %v231
    %v248 = vadd.f32 %v147, %v232
    %v249 = vadd.f32 %v148, %v233
    %v250 = vadd.f32 %v149, %v234
    %v251 = vadd.f32 %v150, %v235
    %v252 = vadd.f32 %v151, %v236
    %v253 = vadd.f32 %v152, %v237
    %v254 = vadd.f32 %v153, %v238
    %v255 = vadd.f32 %v154, %v239
    %v256 = vld [vmem:[%s1 + $0x2] sm:$0x1]
    %257 = vset.pattern.permute.xlu0 2
    %258 = vperm.xlu0 %257, %v22
    %v259 = vpop.permute.xlu0 %258
    %261 = vset.pattern.permute.xlu0 2
    %262 = vperm.xlu0 %261, %v23
    %v263 = vpop.permute.xlu0 %262
    %265 = vset.pattern.permute.xlu0 2
    %266 = vperm.xlu0 %265, %v24
    %v267 = vpop.permute.xlu0 %266
    %269 = vset.pattern.permute.xlu0 2
    %270 = vperm.xlu0 %269, %v25
    %v271 = vpop.permute.xlu0 %270
    %273 = vset.pattern.permute.xlu0 2
    %274 = vperm.xlu0 %273, %v26
    %v275 = vpop.permute.xlu0 %274
    %277 = vset.pattern.permute.xlu0 2
    %278 = vperm.xlu0 %277, %v27
    %v279 = vpop.permute.xlu0 %278
    %281 = vset.pattern.permute.xlu0 2
    %282 = vperm.xlu0 %281, %v28
    %v283 = vpop.permute.xlu0 %282
    %285 = vset.pattern.permute.xlu0 2
    %286 = vperm.xlu0 %285, %v29
    %v287 = vpop.permute.xlu0 %286
    %289 = vset.pattern.permute.xlu0 2
    %290 = vperm.xlu0 %289, %v30
    %v291 = vpop.permute.xlu0 %290
    %293 = vset.pattern.permute.xlu0 2
    %294 = vperm.xlu0 %293, %v31
    %v295 = vpop.permute.xlu0 %294
    %297 = vset.pattern.permute.xlu0 2
    %298 = vperm.xlu0 %297, %v32
    %v299 = vpop.permute.xlu0 %298
    %301 = vset.pattern.permute.xlu0 2
    %302 = vperm.xlu0 %301, %v33
    %v303 = vpop.permute.xlu0 %302
    %305 = vset.pattern.permute.xlu0 2
    %306 = vperm.xlu0 %305, %v34
    %v307 = vpop.permute.xlu0 %306
    %309 = vset.pattern.permute.xlu0 2
    %310 = vperm.xlu0 %309, %v35
    %v311 = vpop.permute.xlu0 %310
    %313 = vset.pattern.permute.xlu0 2
    %314 = vperm.xlu0 %313, %v36
    %v315 = vpop.permute.xlu0 %314
    %317 = vset.pattern.permute.xlu0 2
    %318 = vperm.xlu0 %317, %v37
    %v319 = vpop.permute.xlu0 %318
    %v321 = vlaneseq
    %v322 = vshrl.u32 %v321, 7
    %v323 = vsub.s32 0, %v322
    %v324 = vrot.slane %v256, %v323
    %v325 = vmul.f32 %v259, %v324
    %v326 = vmul.f32 %v263, %v324
    %v327 = vmul.f32 %v267, %v324
    %v328 = vmul.f32 %v271, %v324
    %v329 = vmul.f32 %v275, %v324
    %v330 = vmul.f32 %v279, %v324
    %v331 = vmul.f32 %v283, %v324
    %v332 = vmul.f32 %v287, %v324
    %v333 = vmul.f32 %v291, %v324
    %v334 = vmul.f32 %v295, %v324
    %v335 = vmul.f32 %v299, %v324
    %v336 = vmul.f32 %v303, %v324
    %v337 = vmul.f32 %v307, %v324
    %v338 = vmul.f32 %v311, %v324
    %v339 = vmul.f32 %v315, %v324
    %v340 = vmul.f32 %v319, %v324
    %v341 = vadd.f32 %v240, %v325
    %v342 = vadd.f32 %v241, %v326
    %v343 = vadd.f32 %v242, %v327
    %v344 = vadd.f32 %v243, %v328
    %v345 = vadd.f32 %v244, %v329
    %v346 = vadd.f32 %v245, %v330
    %v347 = vadd.f32 %v246, %v331
    %v348 = vadd.f32 %v247, %v332
    %v349 = vadd.f32 %v248, %v333
    %v350 = vadd.f32 %v249, %v334
    %v351 = vadd.f32 %v250, %v335
    %v352 = vadd.f32 %v251, %v336
    %v353 = vadd.f32 %v252, %v337
    %v354 = vadd.f32 %v253, %v338
    %v355 = vadd.f32 %v254, %v339
    %v356 = vadd.f32 %v255, %v340
    %v357 = vld [vmem:[%s1 + $0x3] sm:$0x1]
    %358 = vset.pattern.permute.xlu0 3
    %359 = vperm.xlu0 %358, %v22
    %v360 = vpop.permute.xlu0 %359
    %362 = vset.pattern.permute.xlu0 3
    %363 = vperm.xlu0 %362, %v23
    %v364 = vpop.permute.xlu0 %363
    %366 = vset.pattern.permute.xlu0 3
    %367 = vperm.xlu0 %366, %v24
    %v368 = vpop.permute.xlu0 %367
    %370 = vset.pattern.permute.xlu0 3
    %371 = vperm.xlu0 %370, %v25
    %v372 = vpop.permute.xlu0 %371
    %374 = vset.pattern.permute.xlu0 3
    %375 = vperm.xlu0 %374, %v26
    %v376 = vpop.permute.xlu0 %375
    %378 = vset.pattern.permute.xlu0 3
    %379 = vperm.xlu0 %378, %v27
    %v380 = vpop.permute.xlu0 %379
    %382 = vset.pattern.permute.xlu0 3
    %383 = vperm.xlu0 %382, %v28
    %v384 = vpop.permute.xlu0 %383
    %386 = vset.pattern.permute.xlu0 3
    %387 = vperm.xlu0 %386, %v29
    %v388 = vpop.permute.xlu0 %387
    %390 = vset.pattern.permute.xlu0 3
    %391 = vperm.xlu0 %390, %v30
    %v392 = vpop.permute.xlu0 %391
    %394 = vset.pattern.permute.xlu0 3
    %395 = vperm.xlu0 %394, %v31
    %v396 = vpop.permute.xlu0 %395
    %398 = vset.pattern.permute.xlu0 3
    %399 = vperm.xlu0 %398, %v32
    %v400 = vpop.permute.xlu0 %399
    %402 = vset.pattern.permute.xlu0 3
    %403 = vperm.xlu0 %402, %v33
    %v404 = vpop.permute.xlu0 %403
    %406 = vset.pattern.permute.xlu0 3
    %407 = vperm.xlu0 %406, %v34
    %v408 = vpop.permute.xlu0 %407
    %410 = vset.pattern.permute.xlu0 3
    %411 = vperm.xlu0 %410, %v35
    %v412 = vpop.permute.xlu0 %411
    %414 = vset.pattern.permute.xlu0 3
    %415 = vperm.xlu0 %414, %v36
    %v416 = vpop.permute.xlu0 %415
    %418 = vset.pattern.permute.xlu0 3
    %419 = vperm.xlu0 %418, %v37
    %v420 = vpop.permute.xlu0 %419
    %v422 = vlaneseq
    %v423 = vshrl.u32 %v422, 7
    %v424 = vsub.s32 0, %v423
    %v425 = vrot.slane %v357, %v424
    %v426 = vmul.f32 %v360, %v425
    %v427 = vmul.f32 %v364, %v425
    %v428 = vmul.f32 %v368, %v425
    %v429 = vmul.f32 %v372, %v425
    %v430 = vmul.f32 %v376, %v425
    %v431 = vmul.f32 %v380, %v425
    %v432 = vmul.f32 %v384, %v425
    %v433 = vmul.f32 %v388, %v425
    %v434 = vmul.f32 %v392, %v425
    %v435 = vmul.f32 %v396, %v425
    %v436 = vmul.f32 %v400, %v425
    %v437 = vmul.f32 %v404, %v425
    %v438 = vmul.f32 %v408, %v425
    %v439 = vmul.f32 %v412, %v425
    %v440 = vmul.f32 %v416, %v425
    %v441 = vmul.f32 %v420, %v425
    %v442 = vadd.f32 %v341, %v426
    %v443 = vadd.f32 %v342, %v427
    %v444 = vadd.f32 %v343, %v428
    %v445 = vadd.f32 %v344, %v429
    %v446 = vadd.f32 %v345, %v430
    %v447 = vadd.f32 %v346, %v431
    %v448 = vadd.f32 %v347, %v432
    %v449 = vadd.f32 %v348, %v433
    %v450 = vadd.f32 %v349, %v434
    %v451 = vadd.f32 %v350, %v435
    %v452 = vadd.f32 %v351, %v436
    %v453 = vadd.f32 %v352, %v437
    %v454 = vadd.f32 %v353, %v438
    %v455 = vadd.f32 %v354, %v439
    %v456 = vadd.f32 %v355, %v440
    %v457 = vadd.f32 %v356, %v441
    %v458 = vmul.f32 %v442, 30.0
    %v459 = vmul.f32 %v443, 30.0
    %v460 = vmul.f32 %v444, 30.0
    %v461 = vmul.f32 %v445, 30.0
    %v462 = vmul.f32 %v446, 30.0
    %v463 = vmul.f32 %v447, 30.0
    %v464 = vmul.f32 %v448, 30.0
    %v465 = vmul.f32 %v449, 30.0
    %v466 = vmul.f32 %v450, 30.0
    %v467 = vmul.f32 %v451, 30.0
    %v468 = vmul.f32 %v452, 30.0
    %v469 = vmul.f32 %v453, 30.0
    %v470 = vmul.f32 %v454, 30.0
    %v471 = vmul.f32 %v455, 30.0
    %v472 = vmul.f32 %v456, 30.0
    %v473 = vmul.f32 %v457, 30.0
    %v474 = vmul.f32 %v458, %v458
    %v475 = vmul.f32 %v459, %v459
    %v476 = vmul.f32 %v460, %v460
    %v477 = vmul.f32 %v461, %v461
    %v478 = vmul.f32 %v462, %v462
    %v479 = vmul.f32 %v463, %v463
    %v480 = vmul.f32 %v464, %v464
    %v481 = vmul.f32 %v465, %v465
    %v482 = vmul.f32 %v466, %v466
    %v483 = vmul.f32 %v467, %v467
    %v484 = vmul.f32 %v468, %v468
    %v485 = vmul.f32 %v469, %v469
    %v486 = vmul.f32 %v470, %v470
    %v487 = vmul.f32 %v471, %v471
    %v488 = vmul.f32 %v472, %v472
    %v489 = vmul.f32 %v473, %v473
    %v490 = vsub.f32 0.0, %v474
    %v491 = vsub.f32 0.0, %v475
    %v492 = vsub.f32 0.0, %v476
    %v493 = vsub.f32 0.0, %v477
    %v494 = vsub.f32 0.0, %v478
    %v495 = vsub.f32 0.0, %v479
    %v496 = vsub.f32 0.0, %v480
    %v497 = vsub.f32 0.0, %v481
    %v498 = vsub.f32 0.0, %v482
    %v499 = vsub.f32 0.0, %v483
    %v500 = vsub.f32 0.0, %v484
    %v501 = vsub.f32 0.0, %v485
    %v502 = vsub.f32 0.0, %v486
    %v503 = vsub.f32 0.0, %v487
    %v504 = vsub.f32 0.0, %v488
    %v505 = vsub.f32 0.0, %v489
    %v506 = vmul.f32 %v490, 1.442695
    %v507 = vpow.pop %v506
    %v508 = vmul.f32 %v491, 1.442695
    %v509 = vpow.pop %v508
    %v510 = vmul.f32 %v492, 1.442695
    %v511 = vpow.pop %v510
    %v512 = vmul.f32 %v493, 1.442695
    %v513 = vpow.pop %v512
    %v514 = vmul.f32 %v494, 1.442695
    %v515 = vpow.pop %v514
    %v516 = vmul.f32 %v495, 1.442695
    %v517 = vpow.pop %v516
    %v518 = vmul.f32 %v496, 1.442695
    %v519 = vpow.pop %v518
    %v520 = vmul.f32 %v497, 1.442695
    %v521 = vpow.pop %v520
    %v522 = vmul.f32 %v498, 1.442695
    %v523 = vpow.pop %v522
    %v524 = vmul.f32 %v499, 1.442695
    %v525 = vpow.pop %v524
    %v526 = vmul.f32 %v500, 1.442695
    %v527 = vpow.pop %v526
    %v528 = vmul.f32 %v501, 1.442695
    %v529 = vpow.pop %v528
    %v530 = vmul.f32 %v502, 1.442695
    %v531 = vpow.pop %v530
    %v532 = vmul.f32 %v503, 1.442695
    %v533 = vpow.pop %v532
    %v534 = vmul.f32 %v504, 1.442695
    %v535 = vpow.pop %v534
    %v536 = vmul.f32 %v505, 1.442695
    %v537 = vpow.pop %v536
    %538 = vst [vmem:[#allocation2] sm:$0xff] %v507
    %539 = vst [vmem:[#allocation2 + $0x8] sm:$0xff] %v509
    %540 = vst [vmem:[#allocation2 + $0x10] sm:$0xff] %v511
    %541 = vst [vmem:[#allocation2 + $0x18] sm:$0xff] %v513
    %542 = vst [vmem:[#allocation2 + $0x20] sm:$0xff] %v515
    %543 = vst [vmem:[#allocation2 + $0x28] sm:$0xff] %v517
    %544 = vst [vmem:[#allocation2 + $0x30] sm:$0xff] %v519
    %545 = vst [vmem:[#allocation2 + $0x38] sm:$0xff] %v521
    %546 = vst [vmem:[#allocation2 + $0x40] sm:$0xff] %v523
    %547 = vst [vmem:[#allocation2 + $0x48] sm:$0xff] %v525
    %548 = vst [vmem:[#allocation2 + $0x50] sm:$0xff] %v527
    %549 = vst [vmem:[#allocation2 + $0x58] sm:$0xff] %v529
    %550 = vst [vmem:[#allocation2 + $0x60] sm:$0xff] %v531
    %551 = vst [vmem:[#allocation2 + $0x68] sm:$0xff] %v533
    %552 = vst [vmem:[#allocation2 + $0x70] sm:$0xff] %v535
    %553 = vst [vmem:[#allocation2 + $0x78] sm:$0xff] %v537
    // Predicated region
    $region14: #{tpu_custom_call.1} parent=1 // pred_check
      _
    $region15: #{tpu_custom_call.1} parent=1 // pred_check_branch
      %555 = sbr.rel (0) target = $region17
    $region16: #{tpu_custom_call.1} parent=1 // pred_region
      %s557 = ssub.s32 2048, 2048
      %558 = vsyncadd [#allocation3], %s557
      %s559 = sshll.u32 [#allocation2], 4
      %s560 = int_to_ptr.vmem [resolvable:$true] %s559
      %565 = dma.vmem_to_hbm [thread:$0]  %s560, 2048, %s3, [#allocation3], 128, 128, 8
    $region17: #{tpu_custom_call.1} parent=1 // pred_fallthru
      _
    // Predicated region
    $region18: #{tpu_custom_call.1} parent=1 // pred_check
      _
    $region19: #{tpu_custom_call.1} parent=1 // pred_check_branch
      %567 = sbr.rel (0) target = $region21
    $region20: #{tpu_custom_call.1} parent=1 // pred_region
      %568 = dma.done [#allocation3], 2048
    $region21: #{tpu_custom_call.1} parent=1 // pred_fallthru
      _
    %569 = vsyncpa [#allocation3], 1

</llo_original>
